<compile_context>
chip_gen: v7x
topology: tpu7x:2x2x1
jax: 0.10.0
libtpu: 0.0.40
codegen_flags: <defaults>
</compile_context>

<pallas_src>
import math
import numpy as np
import jax
import jax.numpy as jnp
from jax import lax
from jax.experimental import pallas as pl
from jax.experimental.pallas import tpu as pltpu

LOG2PI = math.log(2.0 * math.pi)

# ---- problem sizes (small, consistent with the module) ---------------------
B = 2                          # batch
C, H_IMG, W_IMG = 1, 16, 16
D = C * H_IMG * W_IMG          # input_vector_length = 256
HID = 32                       # encoder / decoder hidden size
Z = 8                          # z_size
NUM_IWAE = 1

EPS_W = 128                    # eps carried lane-dense; first Z lanes used
MAX_TILE_B = 512               # batch tile cap (safe for v5e scoped VMEM)

# ---- packed parameter slab layout ([P_ROWS, D], lane-dense) -----------------
W_E1_R0 = 0                    # rows   0:32  -> we1.T            [HID, D]
W_HEAD_R0 = HID                # rows  32:64  -> (wmu|wlv) padded [HID, 2Z]
W_D1_R0 = 2 * HID              # rows  64:72  -> wd1 padded       [Z, HID]
W_D2_R0 = 2 * HID + Z          # rows  72:104 -> wd2              [HID, D]
B_R0 = W_D2_R0 + HID           # rows 104:109 -> be1,bhead,bd1,bd2,x_logvar
P_ROWS = 112                   # padded to a multiple of 8 sublanes

# ---- merged output lane layout ([TB, OUT_W], lane-dense, 3x128) -------------
OUT_W = 384
XM_OFF = 0                     # x_mean            lanes   0:256
PACK_BASE = D                  # small outputs     lanes 256:384
MU_OFF = PACK_BASE             # mu                [B, Z]
LV_OFF = PACK_BASE + Z         # logvar            [B, Z]
Z_OFF = PACK_BASE + 2 * Z      # z                 [B, Z]
LL_OFF = PACK_BASE + 3 * Z     # per-example loglik
KL_OFF = LL_OFF + 1            # per-example kl
ELBO_OFF = LL_OFF + 2          # per-example elbo
LLS_OFF = LL_OFF + 3           # tile sum of loglik (same value in every row)
KLS_OFF = LL_OFF + 4           # tile sum of kl
ELBOS_OFF = LL_OFF + 5         # tile sum of elbo
N_USED = ELBOS_OFF + 1         # 286 lanes used, rest zero


def vae_fwd_kernel(x_ref, eps_ref, p_ref, out_ref):
    x = x_ref[...]                                   # [TB, D]
    eps = eps_ref[:, 0:Z]                            # [TB, Z] pre-drawn N(0,1)
    tb = x.shape[0]

    # ----- parameter slab views (static slices, row offsets 8-aligned) -----
    we1t = p_ref[W_E1_R0:W_E1_R0 + HID, :]                     # [HID, D]
    whead = p_ref[W_HEAD_R0:W_HEAD_R0 + HID, 0:2 * Z]          # [HID, 2Z]
    wd1 = p_ref[W_D1_R0:W_D1_R0 + Z, 0:HID]                    # [Z, HID]
    wd2 = p_ref[W_D2_R0:W_D2_R0 + HID, :]                      # [HID, D]
    be1 = p_ref[B_R0 + 0:B_R0 + 1, 0:HID]                      # [1, HID]
    bhead = p_ref[B_R0 + 1:B_R0 + 2, 0:2 * Z]                  # [1, 2Z]
    bd1 = p_ref[B_R0 + 2:B_R0 + 3, 0:HID]                      # [1, HID]
    bd2 = p_ref[B_R0 + 3:B_R0 + 4, :]                          # [1, D]
    x_lv = p_ref[B_R0 + 4:B_R0 + 5, 0:1]                       # [1, 1]

    # ----- encoder MLP: D -> HID -> fused (mu | logvar) head -----
    h = jnp.tanh(
        lax.dot_general(x, we1t, (((1,), (1,)), ((), ())),
                        preferred_element_type=jnp.float32) + be1)   # [TB, HID]
    head = jnp.dot(h, whead,
                   preferred_element_type=jnp.float32) + bhead       # [TB, 2Z]
    mu = head[:, :Z]
    logvar = head[:, Z:]

    # ----- reparameterize -----
    std = jnp.exp(0.5 * logvar)
    z = eps * std + mu

    # log q(z|x): (z - mu)^2 * exp(-logvar) == eps^2 exactly
    logqz = jnp.sum(-0.5 * (LOG2PI + logvar + eps * eps),
                    axis=-1, keepdims=True)          # [TB, 1]
    # log p(z) = log N(z; 0, I)
    logpz = jnp.sum(-0.5 * (LOG2PI + z * z),
                    axis=-1, keepdims=True)          # [TB, 1]

    # ----- decoder MLP: Z -> HID -> D -----
    hd = jnp.tanh(jnp.dot(z, wd1,
                          preferred_element_type=jnp.float32) + bd1)  # [TB, HID]
    x_mean = jnp.dot(hd, wd2,
                     preferred_element_type=jnp.float32) + bd2        # [TB, D]

    # ----- Gaussian observation log-likelihood (scalar learned x_logvar) -----
    diff = x - x_mean
    loglik = jnp.sum(-0.5 * (LOG2PI + x_lv + diff * diff * jnp.exp(-x_lv)),
                     axis=-1, keepdims=True)         # [TB, 1]

    kl = logqz - logpz
    elbo = loglik - kl

    # in-kernel tile sums, broadcast to every row so the whole merged buffer is
    # still one dense [TB, 384] store
    ll_sum = jnp.broadcast_to(jnp.sum(loglik, axis=0, keepdims=True), (tb, 1))
    kl_sum = jnp.broadcast_to(jnp.sum(kl, axis=0, keepdims=True), (tb, 1))
    elbo_sum = jnp.broadcast_to(jnp.sum(elbo, axis=0, keepdims=True), (tb, 1))

    pad = jnp.zeros((tb, OUT_W - N_USED), jnp.float32)
    out_ref[...] = jnp.concatenate(
        [x_mean, head, z, loglik, kl, elbo, ll_sum, kl_sum, elbo_sum, pad],
        axis=-1)                                     # [TB, 384], lane-dense


def pack_params(params):
    """One-time param prep: single lane-dense [P_ROWS, D] f32 slab."""
    we1, be1, wmu, bmu, wlv, blv, wd1, bd1, wd2, bd2, x_logvar = params

    def pad_to_d(r):
        return jnp.pad(r, ((0, 0), (0, D - r.shape[1])))

    whead = jnp.concatenate([wmu, wlv], axis=1)                  # [HID, 2Z]
    bhead = jnp.concatenate([bmu, blv], axis=1)                  # [1, 2Z]
    rows = [
        we1.T,                      # [HID, D]   (transposed: no lane padding)
        pad_to_d(whead),            # [HID, D]
        pad_to_d(wd1),              # [Z, D]
        wd2,                        # [HID, D]
        pad_to_d(be1),
        pad_to_d(bhead),
        pad_to_d(bd1),
        bd2,
        pad_to_d(x_logvar.reshape(1, 1)),
    ]
    slab = jnp.concatenate(rows, axis=0).astype(jnp.float32)     # [109, D]
    slab = jnp.pad(slab, ((0, P_ROWS - slab.shape[0]), (0, 0)))  # [112, D]
    return slab


def vae_forward(x_nchw, eps128, p_slab):
    """Returns (x_mean, elbo, mu, logvar, -likelihood, logqz - logpz, z)."""
    flat_x = x_nchw.reshape(-1, D).astype(jnp.float32)   # torch .view(-1, D)
    batch = flat_x.shape[0]
    assert NUM_IWAE == 1 and eps128.shape == (batch, EPS_W)  # num_iwae>1 unsupported

    tile_b = batch if batch <= MAX_TILE_B else MAX_TILE_B
    # TODO(synk): ragged last tile for batch sizes not divisible by 512.
    assert batch % tile_b == 0
    n_tiles = batch // tile_b

    # Real dual-TensorCore sharding on v7x needs CORE_PARALLEL (plain
    # "parallel" is a near-no-op); only use it when there is work to split.
    if n_tiles >= 2 and n_tiles % 2 == 0:
        dim_sem = (pltpu.CORE_PARALLEL,)
    else:
        dim_sem = ("arbitrary",)

    out = pl.pallas_call(
        vae_fwd_kernel,
        out_shape=jax.ShapeDtypeStruct((batch, OUT_W), jnp.float32),
        grid_spec=pltpu.PrefetchScalarGridSpec(
            num_scalar_prefetch=0,
            grid=(n_tiles,),
            in_specs=[
                pl.BlockSpec((tile_b, D), lambda i: (i, 0)),      # x
                pl.BlockSpec((tile_b, EPS_W), lambda i: (i, 0)),  # eps (dense)
                pl.BlockSpec((P_ROWS, D), lambda i: (0, 0)),      # param slab
            ],
            out_specs=pl.BlockSpec((tile_b, OUT_W), lambda i: (i, 0)),
        ),
        compiler_params=pltpu.CompilerParams(dimension_semantics=dim_sem),
    )(flat_x, eps128, p_slab)

    x_mean = out[:, XM_OFF:XM_OFF + D]
    mu = out[:, MU_OFF:MU_OFF + Z]
    logvar = out[:, LV_OFF:LV_OFF + Z]
    z = out[:, Z_OFF:Z_OFF + Z]
    # one row per tile carries the tile sums; combine and normalize
    tile_sums = jnp.sum(out[::tile_b, LLS_OFF:ELBOS_OFF + 1], axis=0)
    likelihood = tile_sums[0] / batch
    kld = tile_sums[1] / batch
    elbo = tile_sums[2] / batch
    return x_mean, elbo, mu, logvar, -likelihood, kld, z


def vae_forward_ref(x_nchw, eps, params):
    """Pure-JAX reference of the module's forward (num_iwae=1, exact_kl=False)."""
    we1, be1, wmu, bmu, wlv, blv, wd1, bd1, wd2, bd2, x_logvar = params
    xf = x_nchw.reshape(-1, D).astype(jnp.float32)
    h = jnp.tanh(xf @ we1 + be1)
    mu = h @ wmu + bmu
    logvar = h @ wlv + blv
    z = eps * jnp.exp(0.5 * logvar) + mu
    ln = lambda v, m, lv: jnp.sum(-0.5 * (LOG2PI + lv + (v - m) ** 2 * jnp.exp(-lv)), -1)
    logqz = ln(z, mu, logvar)
    logpz = ln(z, 0.0, 0.0)
    hd = jnp.tanh(z @ wd1 + bd1)
    x_mean = hd @ wd2 + bd2
    loglik = jnp.sum(-0.5 * (LOG2PI + x_logvar
                             + (xf - x_mean) ** 2 * jnp.exp(-x_logvar)), -1)
    kl = logqz - logpz
    return (x_mean, jnp.mean(loglik - kl), mu, logvar,
            -jnp.mean(loglik), jnp.mean(kl), z)


def init_params(key):
    """Deterministic parameter init mimicking nn.Linear defaults."""
    def linear(k, fan_in, fan_out):
        kw, kb = jax.random.split(k)
        bound = 1.0 / math.sqrt(fan_in)
        w = jax.random.uniform(kw, (fan_in, fan_out), jnp.float32, -bound, bound)
        b = jax.random.uniform(kb, (1, fan_out), jnp.float32, -bound, bound)
        return w, b

    k = jax.random.split(key, 5)
    we1, be1 = linear(k[0], D, HID)     # encoder layer 1
    wmu, bmu = linear(k[1], HID, Z)     # encoder -> mu
    wlv, blv = linear(k[2], HID, Z)     # encoder -> logvar
    wd1, bd1 = linear(k[3], Z, HID)     # decoder layer 1
    wd2, bd2 = linear(k[4], HID, D)     # decoder -> x_mean
    x_logvar = jnp.full((1, 1), -1.0, jnp.float32)  # learned scalar dec.x_logvar
    return (we1, be1, wmu, bmu, wlv, blv, wd1, bd1, wd2, bd2, x_logvar)


if __name__ == "__main__":
    key = jax.random.PRNGKey(0)
    kx, keps, kparams = jax.random.split(key, 3)

    x = jax.random.normal(kx, (B, C, H_IMG, W_IMG), jnp.float32)
    # eps generated lane-dense ([B, 128]); first Z lanes are the N(0,1) draws
    eps128 = jax.random.normal(keps, (B * NUM_IWAE, EPS_W), jnp.float32)
    params = init_params(kparams)
    p_slab = pack_params(params)         # one-time param prep (not per call)

    # TODO(synk): sample()/GAN/categorical-decoder branches, exact_kl=True and
    # num_iwae>1 (log_mean_exp) paths are not exercised; eps is passed in
    # (in-kernel PRNG would change the random stream vs. torch.randn).
    fwd = jax.jit(vae_forward)
    out = fwd(x, eps128, p_slab)
    jax.block_until_ready(out)

    x_mean, elbo, mu, logvar, neg_ll, kld, z = out
    assert x_mean.shape == (B, D) and mu.shape == (B, Z) and z.shape == (B, Z)
    assert logvar.shape == (B, Z)
    assert elbo.shape == () and neg_ll.shape == () and kld.shape == ()

    # correctness vs. pure-JAX reference of the module semantics
    ref = vae_forward_ref(x, eps128[:, :Z], params)
    for got, want in zip((x_mean, elbo, mu, logvar, neg_ll, kld, z), ref):
        np.testing.assert_allclose(np.asarray(got), np.asarray(want),
                                   rtol=1e-4, atol=1e-3)

    print("KERNEL_OK")
</pallas_src>

<mosaic_0001>
module attributes {stable_mosaic.version = 11 : i64} {
  func.func @vae_fwd_kernel(%arg0: i32, %arg1: memref<2x256xf32, #tpu.memory_space<vmem>>, %arg2: memref<2x128xf32, #tpu.memory_space<vmem>>, %arg3: memref<112x256xf32, #tpu.memory_space<vmem>>, %arg4: memref<2x384xf32, #tpu.memory_space<vmem>>) attributes {dimension_semantics = [#tpu.dimension_semantics<arbitrary>], iteration_bounds = array<i64: 1>, scalar_prefetch = 0 : i64, scratch_operands = 0 : i64, tpu.core_type = #tpu.core_type<tc>, window_params = [{transform_indices = @transform_0, window_bounds = array<i64: 2, 256>}, {transform_indices = @transform_1, window_bounds = array<i64: 2, 128>}, {pipeline_mode = #tpu.pipeline_mode<synchronous>, transform_indices = @transform_2, window_bounds = array<i64: 112, 256>}, {transform_indices = @transform_3, window_bounds = array<i64: 2, 384>}]} {
    %c0 = arith.constant 0 : index
    %c0_0 = arith.constant 0 : index
    %0 = vector.load %arg1[%c0, %c0_0] : memref<2x256xf32, #tpu.memory_space<vmem>>, vector<2x256xf32>
    %c0_1 = arith.constant 0 : index
    %c0_2 = arith.constant 0 : index
    %1 = vector.load %arg2[%c0_1, %c0_2] : memref<2x128xf32, #tpu.memory_space<vmem>>, vector<2x8xf32>
    %c0_3 = arith.constant 0 : index
    %c0_4 = arith.constant 0 : index
    %2 = vector.load %arg3[%c0_3, %c0_4] : memref<112x256xf32, #tpu.memory_space<vmem>>, vector<32x256xf32>
    %c32 = arith.constant 32 : index
    %c0_5 = arith.constant 0 : index
    %3 = vector.load %arg3[%c32, %c0_5] : memref<112x256xf32, #tpu.memory_space<vmem>>, vector<32x16xf32>
    %c64 = arith.constant 64 : index
    %c0_6 = arith.constant 0 : index
    %4 = vector.load %arg3[%c64, %c0_6] : memref<112x256xf32, #tpu.memory_space<vmem>>, vector<8x32xf32>
    %c72 = arith.constant 72 : index
    %c0_7 = arith.constant 0 : index
    %5 = vector.load %arg3[%c72, %c0_7] : memref<112x256xf32, #tpu.memory_space<vmem>>, vector<32x256xf32>
    %c104 = arith.constant 104 : index
    %c0_8 = arith.constant 0 : index
    %6 = vector.load %arg3[%c104, %c0_8] : memref<112x256xf32, #tpu.memory_space<vmem>>, vector<1x32xf32>
    %c105 = arith.constant 105 : index
    %c0_9 = arith.constant 0 : index
    %7 = vector.load %arg3[%c105, %c0_9] : memref<112x256xf32, #tpu.memory_space<vmem>>, vector<1x16xf32>
    %c106 = arith.constant 106 : index
    %c0_10 = arith.constant 0 : index
    %8 = vector.load %arg3[%c106, %c0_10] : memref<112x256xf32, #tpu.memory_space<vmem>>, vector<1x32xf32>
    %c107 = arith.constant 107 : index
    %c0_11 = arith.constant 0 : index
    %9 = vector.load %arg3[%c107, %c0_11] : memref<112x256xf32, #tpu.memory_space<vmem>>, vector<1x256xf32>
    %c108 = arith.constant 108 : index
    %c0_12 = arith.constant 0 : index
    %10 = vector.load %arg3[%c108, %c0_12] : memref<112x256xf32, #tpu.memory_space<vmem>>, vector<1x1xf32>
    %cst = arith.constant dense<0.000000e+00> : vector<2x32xf32>
    %11 = tpu.matmul %0, %2, %cst {dimension_numbers = #tpu.dot_dimension_numbers<[1], [1], [0], [0], [0, 0, 1, 0], [], []>} : vector<2x256xf32>, vector<32x256xf32>, vector<2x32xf32> -> vector<2x32xf32>
    %12 = vector.broadcast %6 : vector<1x32xf32> to vector<2x32xf32>
    %13 = arith.addf %11, %12 : vector<2x32xf32>
    %14 = math.tanh %13 : vector<2x32xf32>
    %cst_13 = arith.constant dense<0.000000e+00> : vector<2x16xf32>
    %15 = tpu.matmul %14, %3, %cst_13 {dimension_numbers = #tpu.dot_dimension_numbers<[1], [0], [0], [1], [0, 0, 1, 1], [], []>} : vector<2x32xf32>, vector<32x16xf32>, vector<2x16xf32> -> vector<2x16xf32>
    %16 = vector.broadcast %7 : vector<1x16xf32> to vector<2x16xf32>
    %17 = arith.addf %15, %16 : vector<2x16xf32>
    %18 = vector.extract_strided_slice %17 {offsets = [0, 0], sizes = [2, 8], strides = [1, 1]} : vector<2x16xf32> to vector<2x8xf32>
    %19 = vector.extract_strided_slice %17 {offsets = [0, 8], sizes = [2, 8], strides = [1, 1]} : vector<2x16xf32> to vector<2x8xf32>
    %cst_14 = arith.constant 5.000000e-01 : f32
    %20 = vector.broadcast %cst_14 : f32 to vector<2x8xf32>
    %21 = arith.mulf %20, %19 : vector<2x8xf32>
    %22 = math.exp %21 : vector<2x8xf32>
    %23 = arith.mulf %1, %22 : vector<2x8xf32>
    %24 = arith.addf %23, %18 : vector<2x8xf32>
    %cst_15 = arith.constant 1.83787704 : f32
    %25 = vector.broadcast %cst_15 : f32 to vector<2x8xf32>
    %26 = arith.addf %25, %19 : vector<2x8xf32>
    %27 = arith.mulf %1, %1 : vector<2x8xf32>
    %28 = arith.addf %26, %27 : vector<2x8xf32>
    %cst_16 = arith.constant -5.000000e-01 : f32
    %29 = vector.broadcast %cst_16 : f32 to vector<2x8xf32>
    %30 = arith.mulf %29, %28 : vector<2x8xf32>
    %cst_17 = arith.constant dense<0.000000e+00> : vector<2xf32>
    %31 = vector.multi_reduction <add>, %30, %cst_17 [1] : vector<2x8xf32> to vector<2xf32>
    %32 = vector.shape_cast %31 : vector<2xf32> to vector<2x1xf32>
    %33 = arith.mulf %24, %24 : vector<2x8xf32>
    %cst_18 = arith.constant 1.83787704 : f32
    %34 = vector.broadcast %cst_18 : f32 to vector<2x8xf32>
    %35 = arith.addf %34, %33 : vector<2x8xf32>
    %cst_19 = arith.constant -5.000000e-01 : f32
    %36 = vector.broadcast %cst_19 : f32 to vector<2x8xf32>
    %37 = arith.mulf %36, %35 : vector<2x8xf32>
    %cst_20 = arith.constant dense<0.000000e+00> : vector<2xf32>
    %38 = vector.multi_reduction <add>, %37, %cst_20 [1] : vector<2x8xf32> to vector<2xf32>
    %39 = vector.shape_cast %38 : vector<2xf32> to vector<2x1xf32>
    %cst_21 = arith.constant dense<0.000000e+00> : vector<2x32xf32>
    %40 = tpu.matmul %24, %4, %cst_21 {dimension_numbers = #tpu.dot_dimension_numbers<[1], [0], [0], [1], [0, 0, 1, 1], [], []>} : vector<2x8xf32>, vector<8x32xf32>, vector<2x32xf32> -> vector<2x32xf32>
    %41 = vector.broadcast %8 : vector<1x32xf32> to vector<2x32xf32>
    %42 = arith.addf %40, %41 : vector<2x32xf32>
    %43 = math.tanh %42 : vector<2x32xf32>
    %cst_22 = arith.constant dense<0.000000e+00> : vector<2x256xf32>
    %44 = tpu.matmul %43, %5, %cst_22 {dimension_numbers = #tpu.dot_dimension_numbers<[1], [0], [0], [1], [0, 0, 1, 1], [], []>} : vector<2x32xf32>, vector<32x256xf32>, vector<2x256xf32> -> vector<2x256xf32>
    %45 = vector.broadcast %9 : vector<1x256xf32> to vector<2x256xf32>
    %46 = arith.addf %44, %45 : vector<2x256xf32>
    %47 = arith.subf %0, %46 : vector<2x256xf32>
    %cst_23 = arith.constant 1.83787704 : f32
    %48 = vector.broadcast %cst_23 : f32 to vector<1x1xf32>
    %49 = arith.addf %48, %10 : vector<1x1xf32>
    %50 = arith.mulf %47, %47 : vector<2x256xf32>
    %cst_24 = arith.constant 0.000000e+00 : f32
    %51 = vector.broadcast %cst_24 : f32 to vector<1x1xf32>
    %52 = arith.subf %51, %10 : vector<1x1xf32>
    %53 = math.exp %52 : vector<1x1xf32>
    %54 = vector.broadcast %53 : vector<1x1xf32> to vector<2x256xf32>
    %55 = arith.mulf %50, %54 : vector<2x256xf32>
    %56 = vector.broadcast %49 : vector<1x1xf32> to vector<2x256xf32>
    %57 = arith.addf %56, %55 : vector<2x256xf32>
    %cst_25 = arith.constant -5.000000e-01 : f32
    %58 = vector.broadcast %cst_25 : f32 to vector<2x256xf32>
    %59 = arith.mulf %58, %57 : vector<2x256xf32>
    %cst_26 = arith.constant dense<0.000000e+00> : vector<2xf32>
    %60 = vector.multi_reduction <add>, %59, %cst_26 [1] : vector<2x256xf32> to vector<2xf32>
    %61 = vector.shape_cast %60 : vector<2xf32> to vector<2x1xf32>
    %62 = arith.subf %32, %39 : vector<2x1xf32>
    %63 = arith.subf %61, %62 : vector<2x1xf32>
    %cst_27 = arith.constant dense<0.000000e+00> : vector<1xf32>
    %64 = vector.multi_reduction <add>, %61, %cst_27 [0] : vector<2x1xf32> to vector<1xf32>
    %65 = vector.shape_cast %64 : vector<1xf32> to vector<1x1xf32>
    %66 = vector.shape_cast %65 : vector<1x1xf32> to vector<1x1xf32>
    %67 = vector.broadcast %66 : vector<1x1xf32> to vector<2x1xf32>
    %cst_28 = arith.constant dense<0.000000e+00> : vector<1xf32>
    %68 = vector.multi_reduction <add>, %62, %cst_28 [0] : vector<2x1xf32> to vector<1xf32>
    %69 = vector.shape_cast %68 : vector<1xf32> to vector<1x1xf32>
    %70 = vector.shape_cast %69 : vector<1x1xf32> to vector<1x1xf32>
    %71 = vector.broadcast %70 : vector<1x1xf32> to vector<2x1xf32>
    %cst_29 = arith.constant dense<0.000000e+00> : vector<1xf32>
    %72 = vector.multi_reduction <add>, %63, %cst_29 [0] : vector<2x1xf32> to vector<1xf32>
    %73 = vector.shape_cast %72 : vector<1xf32> to vector<1x1xf32>
    %74 = vector.shape_cast %73 : vector<1x1xf32> to vector<1x1xf32>
    %75 = vector.broadcast %74 : vector<1x1xf32> to vector<2x1xf32>
    %cst_30 = arith.constant 0.000000e+00 : f32
    %76 = vector.broadcast %cst_30 : f32 to vector<2x98xf32>
    %77 = tpu.concatenate %46, %17, %24, %61, %62, %63, %67, %71, %75, %76 in 1 : vector<2x256xf32>, vector<2x16xf32>, vector<2x8xf32>, vector<2x1xf32>, vector<2x1xf32>, vector<2x1xf32>, vector<2x1xf32>, vector<2x1xf32>, vector<2x1xf32>, vector<2x98xf32> -> vector<2x384xf32>
    %c0_31 = arith.constant 0 : index
    %c0_32 = arith.constant 0 : index
    %78 = vector.load %arg4[%c0_31, %c0_32] : memref<2x384xf32, #tpu.memory_space<vmem>>, vector<2x384xf32>
    tpu.vector_store %arg4[%c0_31, %c0_32], %77 {strides = array<i32>} : memref<2x384xf32, #tpu.memory_space<vmem>>, vector<2x384xf32>,
    return
  }
  func.func @transform_0(%arg0: i32) -> (i32, i32) {
    %c0_i32 = arith.constant 0 : i32
    %c0_i32_0 = arith.constant 0 : i32
    return %arg0, %c0_i32 : i32, i32
  }
  func.func @transform_1(%arg0: i32) -> (i32, i32) {
    %c0_i32 = arith.constant 0 : i32
    %c0_i32_0 = arith.constant 0 : i32
    return %arg0, %c0_i32 : i32, i32
  }
  func.func @transform_2(%arg0: i32) -> (i32, i32) {
    %c0_i32 = arith.constant 0 : i32
    %c0_i32_0 = arith.constant 0 : i32
    %c0_i32_1 = arith.constant 0 : i32
    return %c0_i32, %c0_i32_0 : i32, i32
  }
  func.func @transform_3(%arg0: i32) -> (i32, i32) {
    %c0_i32 = arith.constant 0 : i32
    %c0_i32_0 = arith.constant 0 : i32
    return %arg0, %c0_i32 : i32, i32
  }
}

</mosaic_0001>

<llo_original>
// kernel: vae_forward.1
$region0: #{vae_forward.1}
  #allocation0 [shape = 'u32[]', space=smem, size = 0x4, offset = 0x4, fixed_abs, tag = 'smem constant byte address 0x4 - core index']
  #allocation1 [shape = 'u32[144,128]{1,0:T(1,128)}', space=vmem, size = 0x12000, scoped, tag = 'internal scratch']
  %s0 = inlined_call_operand.vmem [shape: f32[2,256], index: 0, kind: input, shape index: {}]
  %s1 = inlined_call_operand.vmem [shape: f32[2,128], index: 1, kind: input, shape index: {}]
  %s2 = inlined_call_operand.hbm [shape: f32[112,256], index: 2, kind: input, shape index: {}]
  %s3 = inlined_call_operand.vmem [shape: f32[2,384], index: 3, kind: output, shape index: {}]
  %s4 = sld [smem:[#allocation0]]
  $region26: #{vae_forward.1} parent=0
    _
  %s6 = ssub.s32 1, %s4
  %s7 = scalar_select 0, %s6, %s4
  $region1: #{vae_forward.1} parent=0
    #allocation2 [shape = 'u8[114688]{0}', space=vmem, size = 0x1c000, scoped, tag = 'input window, operand 2, single buffered']
    #allocation3 [shape = 's32[1]{0}', space=sflag, size = 0x4, scoped, tag = 'scoped memory for vae_forward.1']
    %8 = vsyncpa [#allocation3], 0
    // Predicated region
    $region2: #{vae_forward.1} parent=1 // pred_check
      _
    $region3: #{vae_forward.1} parent=1 // pred_check_branch
      %10 = sbr.rel (0) target = $region5
    $region4: #{vae_forward.1} parent=1 // pred_region
      _
    $region5: #{vae_forward.1} parent=1 // pred_fallthru
      _
    // Predicated region
    $region6: #{vae_forward.1} parent=1 // pred_check
      _
    $region7: #{vae_forward.1} parent=1 // pred_check_branch
      %12 = sbr.rel (0) target = $region9
    $region8: #{vae_forward.1} parent=1 // pred_region
      _
    $region9: #{vae_forward.1} parent=1 // pred_fallthru
      _
    // Predicated region
    $region10: #{vae_forward.1} parent=1 // pred_check
      _
    $region11: #{vae_forward.1} parent=1 // pred_check_branch
      %14 = sbr.rel (0) target = $region13
    $region12: #{vae_forward.1} parent=1 // pred_region
      %s16 = ssub.s32 3584, 3584
      %17 = vsyncadd [#allocation3], %s16
      %s18 = sshll.u32 [#allocation2], 4
      %s19 = int_to_ptr.vmem [resolvable:$true] %s18
      %24 = dma.hbm_to_vmem [thread:$0]  %s2, 3584, %s19, [#allocation3], 256, 256, 16
    $region13: #{vae_forward.1} parent=1 // pred_fallthru
      _
    // Predicated region
    $region14: #{vae_forward.1} parent=1 // pred_check
      _
    $region15: #{vae_forward.1} parent=1 // pred_check_branch
      %26 = sbr.rel (0) target = $region17
    $region16: #{vae_forward.1} parent=1 // pred_region
      %27 = dma.done [#allocation3], 3584
    $region17: #{vae_forward.1} parent=1 // pred_fallthru
      _
    %v28 = vld [vmem:[%s0] sm:$0xf]
    %v29 = vld [vmem:[%s1] sm:$0x3]
    %v30 = vld [vmem:[#allocation2] sm:$0xff]
    %v31 = vld [vmem:[#allocation2 + $0x8] sm:$0xff]
    %v32 = vld [vmem:[#allocation2 + $0x10] sm:$0xff]
    %v33 = vld [vmem:[#allocation2 + $0x18] sm:$0xff]
    %v34 = vld [vmem:[#allocation2 + $0x20] sm:$0xff]
    %v35 = vld [vmem:[#allocation2 + $0x28] sm:$0xff]
    %v36 = vld [vmem:[#allocation2 + $0x30] sm:$0xff]
    %v37 = vld [vmem:[#allocation2 + $0x38] sm:$0xff]
    %v38 = vld [vmem:[#allocation2 + $0x40] sm:$0xff]
    %v39 = vld [vmem:[#allocation2 + $0x50] sm:$0xff]
    %v40 = vld [vmem:[#allocation2 + $0x60] sm:$0xff]
    %v41 = vld [vmem:[#allocation2 + $0x70] sm:$0xff]
    %v42 = vld [vmem:[#allocation2 + $0x80] sm:$0xff]
    %v43 = vld [vmem:[#allocation2 + $0x90] sm:$0xff]
    %v44 = vld [vmem:[#allocation2 + $0x98] sm:$0xff]
    %v45 = vld [vmem:[#allocation2 + $0xa0] sm:$0xff]
    %v46 = vld [vmem:[#allocation2 + $0xa8] sm:$0xff]
    %v47 = vld [vmem:[#allocation2 + $0xb0] sm:$0xff]
    %v48 = vld [vmem:[#allocation2 + $0xb8] sm:$0xff]
    %v49 = vld [vmem:[#allocation2 + $0xc0] sm:$0xff]
    %v50 = vld [vmem:[#allocation2 + $0xc8] sm:$0xff]
    %v51 = vld [vmem:[#allocation2 + $0xd0] ss:$0 sm:$0xff]
    %v52 = vld [vmem:[#allocation2 + $0xd1] ss:$0 sm:$0xff]
    %v53 = vld [vmem:[#allocation2 + $0xd2] ss:$0 sm:$0xff]
    %s54 = scalar_lea.vmem [#allocation2], 211
    %v55 = vld [vmem:[%s54] ss:$8 sm:$0x3]
    %v56 = vld [vmem:[#allocation2 + $0xd4] ss:$0 sm:$0xff]
    %v59 = vunpack.c.l.s4 1983009808
    %v60 = vunpack.c.0.s8 %v59
    %v61 = vlaneseq
    %v62 = vshrl.u32 %v61, 7
    %v63 = vsub.s32 %v60, %v62
    %v64 = vrot.slane %v28, %v63
    %v65 = vcombine.high %v64, %v64
    %68 = vmatprep.subr.mxu0 %v31
    %69 = vmatpush1.xpose.msra.mxu0 %v30
    %70 = vmatprep.subr.mxu0 %v33
    %71 = vmatpush1.xpose.msra.mxu0 %v32
    %72 = vmatprep.subr.mxu0 %v35
    %73 = vmatpush1.xpose.msra.mxu0 %v34
    %74 = vmatprep.subr.mxu0 %v37
    %75 = vmatpush1.xpose.msra.mxu0 %v36
    %76 = vmatprep.subr.mxu0 0.0
    %77 = vmatpush1.xpose.msra.mxu0 0.0
    %78 = vmatprep.subr.mxu0 0.0
    %79 = vmatpush1.xpose.msra.mxu0 0.0
    %80 = vmatprep.subr.mxu0 0.0
    %81 = vmatpush1.xpose.msra.mxu0 0.0
    %82 = vmatprep.subr.mxu0 0.0
    %83 = vmatpush1.xpose.msra.mxu0 0.0
    %84 = vmatprep.subr.mxu0 0.0
    %85 = vmatpush1.xpose.msra.mxu0 0.0
    %86 = vmatprep.subr.mxu0 0.0
    %87 = vmatpush1.xpose.msra.mxu0 0.0
    %88 = vmatprep.subr.mxu0 0.0
    %89 = vmatpush1.xpose.msra.mxu0 0.0
    %90 = vmatprep.subr.mxu0 0.0
    %91 = vmatpush1.xpose.msra.mxu0 0.0
    %92 = vmatprep.subr.mxu0 0.0
    %93 = vmatpush1.xpose.msra.mxu0 0.0
    %94 = vmatprep.subr.mxu0 0.0
    %95 = vmatpush1.xpose.msra.mxu0 0.0
    %96 = vmatprep.subr.mxu0 0.0
    %97 = vmatpush1.xpose.msra.mxu0 0.0
    %98 = vmatprep.subr.mxu0 0.0
    %99 = vmatpush1.xpose.msra.mxu0 0.0
    %100 = vmatprep.subr.mxu0 0.0
    %101 = vmatpush1.xpose.msra.mxu0 0.0
    %102 = vmatprep.subr.mxu0 0.0
    %103 = vmatpush1.xpose.msra.mxu0 0.0
    %104 = vmatprep.subr.mxu0 0.0
    %105 = vmatpush1.xpose.msra.mxu0 0.0
    %106 = vmatprep.subr.mxu0 0.0
    %107 = vmatpush1.xpose.msra.mxu0 0.0
    %108 = vmatprep.subr.mxu0 0.0
    %109 = vmatpush1.xpose.msra.mxu0 0.0
    %110 = vmatprep.subr.mxu0 0.0
    %111 = vmatpush1.xpose.msra.mxu0 0.0
    %112 = vmatprep.subr.mxu0 0.0
    %113 = vmatpush1.xpose.msra.mxu0 0.0
    %114 = vmatprep.subr.mxu0 0.0
    %115 = vmatpush1.xpose.msra.mxu0 0.0
    %116 = vmatprep.subr.mxu0 0.0
    %117 = vmatpush1.xpose.msra.mxu0 0.0
    %118 = vmatprep.subr.mxu0 0.0
    %119 = vmatpush1.xpose.msra.mxu0 0.0
    %120 = vmatprep.subr.mxu0 0.0
    %121 = vmatpush1.xpose.msra.mxu0 0.0
    %122 = vmatprep.subr.mxu0 0.0
    %123 = vmatpush1.xpose.msra.mxu0 0.0
    %124 = vmatprep.subr.mxu0 0.0
    %125 = vmatpush1.xpose.msra.mxu0 0.0
    %126 = vmatprep.subr.mxu0 0.0
    %127 = vmatpush1.xpose.msra.mxu0 0.0
    %128 = vmatprep.subr.mxu0 0.0
    %129 = vmatpush1.xpose.msra.mxu0 0.0
    %130 = vmatprep.subr.mxu0 0.0
    %131 = vmatpush1.xpose.msra.mxu0 0.0
    %132 = vmatprep.mubr.f32.mxu0 %v65
    %133 = vmatmul.mubr.f32.gmra.mrb[0].mxu0 %v64
    %v134 = vpop.f32.mrb[0].mxu0
    %v135 = vadd.f32 %v51, %v134
    %v136 = vpop.f32.mrb[0].mxu0
    %137 = vdwg.mxu0
    %v138 = vtanh.pop %v135
    %vm139 = vcmask 261120
    %v141 = vsel %vm139, %v138, 0
    %143 = vmatprep.subr.mxu0 0.0
    %144 = vmatpush1.msra.mxu0 %v38
    %145 = vmatprep.subr.mxu0 0.0
    %146 = vmatpush1.msra.mxu0 %v39
    %147 = vmatprep.subr.mxu0 0.0
    %148 = vmatpush1.msra.mxu0 %v40
    %149 = vmatprep.subr.mxu0 0.0
    %150 = vmatpush1.msra.mxu0 %v41
    %151 = vmatprep.subr.mxu0 0.0
    %152 = vmatpush1.msra.mxu0 0.0
    %153 = vmatprep.subr.mxu0 0.0
    %154 = vmatpush1.msra.mxu0 0.0
    %155 = vmatprep.subr.mxu0 0.0
    %156 = vmatpush1.msra.mxu0 0.0
    %157 = vmatprep.subr.mxu0 0.0
    %158 = vmatpush1.msra.mxu0 0.0
    %159 = vmatprep.subr.mxu0 0.0
    %160 = vmatpush1.msra.mxu0 0.0
    %161 = vmatprep.subr.mxu0 0.0
    %162 = vmatpush1.msra.mxu0 0.0
    %163 = vmatprep.subr.mxu0 0.0
    %164 = vmatpush1.msra.mxu0 0.0
    %165 = vmatprep.subr.mxu0 0.0
    %166 = vmatpush1.msra.mxu0 0.0
    %167 = vmatprep.subr.mxu0 0.0
    %168 = vmatpush1.msra.mxu0 0.0
    %169 = vmatprep.subr.mxu0 0.0
    %170 = vmatpush1.msra.mxu0 0.0
    %171 = vmatprep.subr.mxu0 0.0
    %172 = vmatpush1.msra.mxu0 0.0
    %173 = vmatprep.subr.mxu0 0.0
    %174 = vmatpush1.msra.mxu0 0.0
    %175 = vmatprep.subr.mxu0 0.0
    %176 = vmatpush1.msra.mxu0 0.0
    %177 = vmatprep.subr.mxu0 0.0
    %178 = vmatpush1.msra.mxu0 0.0
    %179 = vmatprep.subr.mxu0 0.0
    %180 = vmatpush1.msra.mxu0 0.0
    %181 = vmatprep.subr.mxu0 0.0
    %182 = vmatpush1.msra.mxu0 0.0
    %183 = vmatprep.subr.mxu0 0.0
    %184 = vmatpush1.msra.mxu0 0.0
    %185 = vmatprep.subr.mxu0 0.0
    %186 = vmatpush1.msra.mxu0 0.0
    %187 = vmatprep.subr.mxu0 0.0
    %188 = vmatpush1.msra.mxu0 0.0
    %189 = vmatprep.subr.mxu0 0.0
    %190 = vmatpush1.msra.mxu0 0.0
    %191 = vmatprep.subr.mxu0 0.0
    %192 = vmatpush1.msra.mxu0 0.0
    %193 = vmatprep.subr.mxu0 0.0
    %194 = vmatpush1.msra.mxu0 0.0
    %195 = vmatprep.subr.mxu0 0.0
    %196 = vmatpush1.msra.mxu0 0.0
    %197 = vmatprep.subr.mxu0 0.0
    %198 = vmatpush1.msra.mxu0 0.0
    %199 = vmatprep.subr.mxu0 0.0
    %200 = vmatpush1.msra.mxu0 0.0
    %201 = vmatprep.subr.mxu0 0.0
    %202 = vmatpush1.msra.mxu0 0.0
    %203 = vmatprep.subr.mxu0 0.0
    %204 = vmatpush1.msra.mxu0 0.0
    %205 = vmatprep.subr.mxu0 0.0
    %206 = vmatpush1.msra.mxu0 0.0
    %207 = vmatprep.mubr.f32.mxu0 0.0
    %208 = vmatmul.mubr.f32.gmra.mrb[0].mxu0 %v141
    %v209 = vpop.f32.mrb[0].mxu0
    %v210 = vadd.f32 %v52, %v209
    %v211 = vpop.f32.mrb[0].mxu0
    %212 = vdwg.mxu0
    %v213 = vmul.f32 %v210, 0.5
    %v214 = vmul.f32 %v213, 1.442695
    %v215 = vpow.pop %v214
    %217 = vrot.lane.b32.xlu0 %v215, 120
    %v218 = vpop.permute.xlu0 %217
    %v220 = vmul.f32 %v29, %v218
    %v221 = vadd.f32 %v220, %v210
    %v222 = vadd.f32 %v210, 1.837877
    %v223 = vmul.f32 %v29, %v29
    %225 = vrot.lane.b32.xlu0 %v223, 8
    %v226 = vpop.permute.xlu0 %225
    %v228 = vadd.f32 %v222, %v226
    %v229 = vmul.f32 %v228, -0.5
    %231 = vrot.lane.b32.xlu0 %v229, 120
    %v232 = vpop.permute.xlu0 %231
    %vm234 = vcmask 58368
    %v235 = vsel %vm234, %v232, 0.0
    %236 = vadd.xlane.f32.xlu0 %v235
    %v237 = vpop.xlane.xlu0 %236
    %v238 = vmul.f32 %v221, %v221
    %v239 = vadd.f32 %v238, 1.837877
    %v240 = vmul.f32 %v239, -0.5
    %v241 = vsel %vm234, %v240, 0.0
    %242 = vadd.xlane.f32.xlu0 %v241
    %v243 = vpop.xlane.xlu0 %242
    %vm244 = vcmask 64512
    %v246 = vsel %vm244, %v221, 0
    %248 = vmatprep.subr.mxu0 0.0
    %249 = vmatpush1.msra.mxu0 %v42
    %250 = vmatprep.subr.mxu0 0.0
    %251 = vmatpush1.msra.mxu0 0.0
    %252 = vmatprep.subr.mxu0 0.0
    %253 = vmatpush1.msra.mxu0 0.0
    %254 = vmatprep.subr.mxu0 0.0
    %255 = vmatpush1.msra.mxu0 0.0
    %256 = vmatprep.subr.mxu0 0.0
    %257 = vmatpush1.msra.mxu0 0.0
    %258 = vmatprep.subr.mxu0 0.0
    %259 = vmatpush1.msra.mxu0 0.0
    %260 = vmatprep.subr.mxu0 0.0
    %261 = vmatpush1.msra.mxu0 0.0
    %262 = vmatprep.subr.mxu0 0.0
    %263 = vmatpush1.msra.mxu0 0.0
    %264 = vmatprep.subr.mxu0 0.0
    %265 = vmatpush1.msra.mxu0 0.0
    %266 = vmatprep.subr.mxu0 0.0
    %267 = vmatpush1.msra.mxu0 0.0
    %268 = vmatprep.subr.mxu0 0.0
    %269 = vmatpush1.msra.mxu0 0.0
    %270 = vmatprep.subr.mxu0 0.0
    %271 = vmatpush1.msra.mxu0 0.0
    %272 = vmatprep.subr.mxu0 0.0
    %273 = vmatpush1.msra.mxu0 0.0
    %274 = vmatprep.subr.mxu0 0.0
    %275 = vmatpush1.msra.mxu0 0.0
    %276 = vmatprep.subr.mxu0 0.0
    %277 = vmatpush1.msra.mxu0 0.0
    %278 = vmatprep.subr.mxu0 0.0
    %279 = vmatpush1.msra.mxu0 0.0
    %280 = vmatprep.subr.mxu0 0.0
    %281 = vmatpush1.msra.mxu0 0.0
    %282 = vmatprep.subr.mxu0 0.0
    %283 = vmatpush1.msra.mxu0 0.0
    %284 = vmatprep.subr.mxu0 0.0
    %285 = vmatpush1.msra.mxu0 0.0
    %286 = vmatprep.subr.mxu0 0.0
    %287 = vmatpush1.msra.mxu0 0.0
    %288 = vmatprep.subr.mxu0 0.0
    %289 = vmatpush1.msra.mxu0 0.0
    %290 = vmatprep.subr.mxu0 0.0
    %291 = vmatpush1.msra.mxu0 0.0
    %292 = vmatprep.subr.mxu0 0.0
    %293 = vmatpush1.msra.mxu0 0.0
    %294 = vmatprep.subr.mxu0 0.0
    %295 = vmatpush1.msra.mxu0 0.0
    %296 = vmatprep.subr.mxu0 0.0
    %297 = vmatpush1.msra.mxu0 0.0
    %298 = vmatprep.subr.mxu0 0.0
    %299 = vmatpush1.msra.mxu0 0.0
    %300 = vmatprep.subr.mxu0 0.0
    %301 = vmatpush1.msra.mxu0 0.0
    %302 = vmatprep.subr.mxu0 0.0
    %303 = vmatpush1.msra.mxu0 0.0
    %304 = vmatprep.subr.mxu0 0.0
    %305 = vmatpush1.msra.mxu0 0.0
    %306 = vmatprep.subr.mxu0 0.0
    %307 = vmatpush1.msra.mxu0 0.0
    %308 = vmatprep.subr.mxu0 0.0
    %309 = vmatpush1.msra.mxu0 0.0
    %310 = vmatprep.subr.mxu0 0.0
    %311 = vmatpush1.msra.mxu0 0.0
    %312 = vmatprep.mubr.f32.mxu0 0.0
    %313 = vmatmul.mubr.f32.gmra.mrb[0].mxu0 %v246
    %v314 = vpop.f32.mrb[0].mxu0
    %v315 = vadd.f32 %v53, %v314
    %v316 = vpop.f32.mrb[0].mxu0
    %317 = vdwg.mxu0
    %v318 = vtanh.pop %v315
    %v320 = vlaneseq
    %v321 = vshrl.u32 %v320, 7
    %v322 = vsub.s32 0, %v321
    %v323 = vrot.slane %v55, %v322
    %v324 = vlaneseq
    %v325 = vshrl.u32 %v324, 7
    %v326 = vsub.s32 1, %v325
    %v327 = vrot.slane %v55, %v326
    %v331 = vsel %vm139, %v318, 0
    %333 = vmatprep.subr.mxu0 %v44
    %334 = vmatpush1.msra.mxu0 %v43
    %335 = vmatprep.subr.mxu0 %v46
    %336 = vmatpush1.msra.mxu0 %v45
    %337 = vmatprep.subr.mxu0 %v48
    %338 = vmatpush1.msra.mxu0 %v47
    %339 = vmatprep.subr.mxu0 %v50
    %340 = vmatpush1.msra.mxu0 %v49
    %341 = vmatprep.subr.mxu0 0.0
    %342 = vmatpush1.msra.mxu0 0.0
    %343 = vmatprep.subr.mxu0 0.0
    %344 = vmatpush1.msra.mxu0 0.0
    %345 = vmatprep.subr.mxu0 0.0
    %346 = vmatpush1.msra.mxu0 0.0
    %347 = vmatprep.subr.mxu0 0.0
    %348 = vmatpush1.msra.mxu0 0.0
    %349 = vmatprep.subr.mxu0 0.0
    %350 = vmatpush1.msra.mxu0 0.0
    %351 = vmatprep.subr.mxu0 0.0
    %352 = vmatpush1.msra.mxu0 0.0
    %353 = vmatprep.subr.mxu0 0.0
    %354 = vmatpush1.msra.mxu0 0.0
    %355 = vmatprep.subr.mxu0 0.0
    %356 = vmatpush1.msra.mxu0 0.0
    %357 = vmatprep.subr.mxu0 0.0
    %358 = vmatpush1.msra.mxu0 0.0
    %359 = vmatprep.subr.mxu0 0.0
    %360 = vmatpush1.msra.mxu0 0.0
    %361 = vmatprep.subr.mxu0 0.0
    %362 = vmatpush1.msra.mxu0 0.0
    %363 = vmatprep.subr.mxu0 0.0
    %364 = vmatpush1.msra.mxu0 0.0
    %365 = vmatprep.subr.mxu0 0.0
    %366 = vmatpush1.msra.mxu0 0.0
    %367 = vmatprep.subr.mxu0 0.0
    %368 = vmatpush1.msra.mxu0 0.0
    %369 = vmatprep.subr.mxu0 0.0
    %370 = vmatpush1.msra.mxu0 0.0
    %371 = vmatprep.subr.mxu0 0.0
    %372 = vmatpush1.msra.mxu0 0.0
    %373 = vmatprep.subr.mxu0 0.0
    %374 = vmatpush1.msra.mxu0 0.0
    %375 = vmatprep.subr.mxu0 0.0
    %376 = vmatpush1.msra.mxu0 0.0
    %377 = vmatprep.subr.mxu0 0.0
    %378 = vmatpush1.msra.mxu0 0.0
    %379 = vmatprep.subr.mxu0 0.0
    %380 = vmatpush1.msra.mxu0 0.0
    %381 = vmatprep.subr.mxu0 0.0
    %382 = vmatpush1.msra.mxu0 0.0
    %383 = vmatprep.subr.mxu0 0.0
    %384 = vmatpush1.msra.mxu0 0.0
    %385 = vmatprep.subr.mxu0 0.0
    %386 = vmatpush1.msra.mxu0 0.0
    %387 = vmatprep.subr.mxu0 0.0
    %388 = vmatpush1.msra.mxu0 0.0
    %389 = vmatprep.subr.mxu0 0.0
    %390 = vmatpush1.msra.mxu0 0.0
    %391 = vmatprep.subr.mxu0 0.0
    %392 = vmatpush1.msra.mxu0 0.0
    %393 = vmatprep.subr.mxu0 0.0
    %394 = vmatpush1.msra.mxu0 0.0
    %395 = vmatprep.subr.mxu0 0.0
    %396 = vmatpush1.msra.mxu0 0.0
    %397 = vmatprep.mubr.f32.mxu0 0.0
    %398 = vmatmul.mubr.f32.gmra.mrb[0].mxu0 %v331
    %v399 = vpop.f32.mrb[0].mxu0
    %v400 = vadd.f32 %v323, %v399
    %v401 = vpop.f32.mrb[0].mxu0
    %v402 = vadd.f32 %v327, %v401
    %403 = vdwg.mxu0
    %v406 = vcombine.low %v400, %v402
    %v408 = vunpack.c.l.s4 1983009808
    %v409 = vunpack.c.0.s8 %v408
    %v410 = vlaneseq
    %v411 = vshrl.u32 %v410, 7
    %v412 = vsub.s32 %v409, %v411
    %v413 = vrot.slane %v406, %v412
    %v415 = vsub.f32 %v28, %v413
    %v416 = vadd.f32 %v56, 1.837877
    %v417 = vmul.f32 %v415, %v415
    %v418 = vsub.f32 0.0, %v56
    %v419 = vmul.f32 %v418, 1.442695
    %v420 = vpow.pop %v419
    %422 = vset.pattern.permute.xlu0 0
    %423 = vperm.xlu0 %422, %v420
    %v424 = vpop.permute.xlu0 %423
    %v426 = vmul.f32 %v417, %v424
    %428 = vset.pattern.permute.xlu0 0
    %429 = vperm.xlu0 %428, %v416
    %v430 = vpop.permute.xlu0 %429
    %v432 = vadd.f32 %v430, %v426
    %v433 = vmul.f32 %v432, -0.5
    %v436 = vunpack.c.l.s4 1983009808
    %v437 = vunpack.c.0.s8 %v436
    %v438 = vlaneseq
    %v439 = vshrl.u32 %v438, 7
    %v440 = vsub.s32 %v437, %v439
    %v441 = vrot.slane %v433, %v440
    %v442 = vcombine.high %v441, %v441
    %vm445 = vcmask 1041408
    %v446 = vsel %vm445, %v441, 0.0
    %v447 = vsel %vm445, %v442, 0.0
    %v448 = vadd.f32 %v446, %v447
    %449 = vadd.xlane.f32.xlu0 %v448
    %v450 = vpop.xlane.xlu0 %449
    %v451 = vsub.f32 %v237, %v243
    %v452 = vsub.f32 %v450, %v451
    %v453 = vsel %vm445, %v450, 0.0
    %v454 = vrot.slane %v453, 4
    %v455 = vadd.f32 %v453, %v454
    %v456 = vrot.slane %v455, 2
    %v457 = vadd.f32 %v455, %v456
    %v458 = vrot.slane %v457, 1
    %v459 = vadd.f32 %v457, %v458
    %v460 = vsel %vm445, %v451, 0.0
    %v461 = vrot.slane %v460, 4
    %v462 = vadd.f32 %v460, %v461
    %v463 = vrot.slane %v462, 2
    %v464 = vadd.f32 %v462, %v463
    %v465 = vrot.slane %v464, 1
    %v466 = vadd.f32 %v464, %v465
    %v467 = vsel %vm445, %v452, 0.0
    %v468 = vrot.slane %v467, 4
    %v469 = vadd.f32 %v467, %v468
    %v470 = vrot.slane %v469, 2
    %v471 = vadd.f32 %v469, %v470
    %v472 = vrot.slane %v471, 1
    %v473 = vadd.f32 %v471, %v472
    %474 = vrot.lane.b32.xlu0 %v221, 16
    %v475 = vpop.permute.xlu0 %474
    %vm477 = vcmask 130048
    %v478 = vsel %vm477, %v210, %v475
    %vm479 = vcmask 195584
    %v480 = vsel %vm479, %v478, %v450
    %vm481 = vcmask 203776
    %v482 = vsel %vm481, %v480, %v451
    %vm483 = vcmask 211968
    %v484 = vsel %vm483, %v482, %v452
    %vm485 = vcmask 220160
    %v486 = vsel %vm485, %v484, %v459
    %vm487 = vcmask 228352
    %v488 = vsel %vm487, %v486, %v466
    %vm489 = vcmask 236544
    %v490 = vsel %vm489, %v488, %v473
    %vm491 = vcmask 244736
    %v492 = vsel %vm491, %v490, 0.0
    %v495 = vunpack.c.l.s4 1983009808
    %v496 = vunpack.c.0.s8 %v495
    %v497 = vlaneseq
    %v498 = vshrl.u32 %v497, 7
    %v499 = vsub.s32 %v496, %v498
    %v500 = vrot.slane %v492, %v499
    %v501 = vcombine.low %v413, %v500
    %503 = vst [vmem:[%s3] sm:$0x3f] %v501
    // Predicated region
    $region18: #{vae_forward.1} parent=1 // pred_check
      _
    $region19: #{vae_forward.1} parent=1 // pred_check_branch
      %505 = sbr.rel (0) target = $region21
    $region20: #{vae_forward.1} parent=1 // pred_region
      _
    $region21: #{vae_forward.1} parent=1 // pred_fallthru
      _
    // Predicated region
    $region22: #{vae_forward.1} parent=1 // pred_check
      _
    $region23: #{vae_forward.1} parent=1 // pred_check_branch
      %507 = sbr.rel (0) target = $region25
    $region24: #{vae_forward.1} parent=1 // pred_region
      _
    $region25: #{vae_forward.1} parent=1 // pred_fallthru
      _
    %508 = vsyncpa [#allocation3], 1

</llo_original>
